<compile_context>
chip_gen: v7x
topology: tpu7x:2x2x1
jax: 0.10.0
libtpu: 0.0.40
codegen_flags: <defaults>
</compile_context>

<pallas_src>
import functools

import jax
import jax.numpy as jnp
from jax.experimental import pallas as pl
from jax.experimental.pallas import tpu as pltpu


def _coupled_pooling_kernel(x_ref, mean_ref, max_ref, sum_acc, max_acc,
                            *, s_total, needs_mask):
    s = pl.program_id(1)

    @pl.when(s == 0)
    def _init():
        sum_acc[...] = jnp.zeros_like(sum_acc)
        max_acc[...] = jnp.full_like(max_acc, -jnp.inf)

    x = x_ref[...]                               # (TB, TS, D), native dtype
    if needs_mask:
        ts = x.shape[1]
        # (1, TS, 1) row index; broadcasts inside jnp.where -> cheap VPU work.
        row = jax.lax.broadcasted_iota(jnp.int32, (1, ts, 1), 1)
        valid = (s * ts + row) < s_total
        x_sum = jnp.where(valid, x, 0.0)         # neutral for sum
        x_max = jnp.where(valid, x, -jnp.inf)    # neutral for max
    else:
        x_sum = x
        x_max = x

    # Sum accumulates in f32 for accuracy; max reduces in native dtype and
    # only the (TB, D) result is widened.
    sum_acc[...] += jnp.sum(x_sum, axis=1, dtype=jnp.float32)
    max_acc[...] = jnp.maximum(max_acc[...],
                               jnp.max(x_max, axis=1).astype(jnp.float32))

    @pl.when(s == pl.num_programs(1) - 1)
    def _finalize():
        inv_s = jnp.float32(1.0 / s_total)       # finalize-time scale only
        mean_ref[...] = (sum_acc[...] * inv_s).astype(mean_ref.dtype)
        max_ref[...] = max_acc[...].astype(max_ref.dtype)


def coupled_pooling(x, *, vmem_block_budget_bytes=6 * 1024 * 1024):
    """x: (B, S, D) -> (B, 2*D). Mean pooling then max pooling, concatenated."""
    B, S, D = x.shape
    itemsize = jnp.dtype(x.dtype).itemsize

    # Batch tile: full batch if small, else 8 rows per step.
    TB = B if B <= 8 else 8

    # Largest S-tile whose (TB, TS, D) input block fits the per-buffer budget
    # (the auto-pipeline double-buffers it => ~2x this live in VMEM).
    ts_cap = max(8, vmem_block_budget_bytes // max(1, TB * D * itemsize))
    if ts_cap >= S:
        TS = S                                   # full sequence in one block
    else:
        TS = max(8, (ts_cap // 8) * 8)           # keep (8, 128) tiling rule

    grid = (pl.cdiv(B, TB), pl.cdiv(S, TS))
    needs_mask = (S % TS) != 0

    kernel = functools.partial(_coupled_pooling_kernel,
                               s_total=S, needs_mask=needs_mask)

    cost = pl.CostEstimate(
        flops=2 * B * S * D,
        transcendentals=0,
        bytes_accessed=B * S * D * itemsize + 2 * B * D * itemsize,
    )

    mean_out, max_out = pl.pallas_call(
        kernel,
        out_shape=(jax.ShapeDtypeStruct((B, D), x.dtype),
                   jax.ShapeDtypeStruct((B, D), x.dtype)),
        grid_spec=pltpu.PrefetchScalarGridSpec(
            num_scalar_prefetch=0,
            grid=grid,
            in_specs=[pl.BlockSpec((TB, TS, D), lambda b, s: (b, s, 0))],
            out_specs=(pl.BlockSpec((TB, D), lambda b, s: (b, 0)),
                       pl.BlockSpec((TB, D), lambda b, s: (b, 0))),
            scratch_shapes=[pltpu.VMEM((TB, D), jnp.float32),   # running sum
                            pltpu.VMEM((TB, D), jnp.float32)],  # running max
        ),
        compiler_params=pltpu.CompilerParams(
            dimension_semantics=("parallel", "arbitrary")),
        cost_estimate=cost,
    )(x)

    # torch.cat([mean(x), max(x)], dim=1)
    return jnp.concatenate([mean_out, max_out], axis=1)


def coupled_pooling_ref(x):
    xf = x.astype(jnp.float32)
    mean_pool = jnp.mean(xf, axis=1)
    max_pool = jnp.max(xf, axis=1)
    return jnp.concatenate([mean_pool, max_pool], axis=1).astype(x.dtype)


if __name__ == "__main__":
    key = jax.random.PRNGKey(0)

    # Small shape consistent with the module: batch=2, seq=8, hidden=32.
    B, S, D = 2, 8, 32
    x = jax.random.normal(key, (B, S, D), dtype=jnp.float32)

    out = coupled_pooling(x)
    out = jax.block_until_ready(out)
    ref = coupled_pooling_ref(x)
    assert out.shape == (B, 2 * D), out.shape
    assert jnp.allclose(out, ref, atol=1e-5, rtol=1e-5), "mismatch vs reference"

    # Second tiny case exercising the multi-tile + masked (S % TS != 0) path
    # by forcing a small S-tile through the VMEM budget knob.
    B2, S2, D2 = 2, 24, 128
    x2 = jax.random.normal(jax.random.PRNGKey(1), (B2, S2, D2), dtype=jnp.float32)
    out2 = coupled_pooling(x2, vmem_block_budget_bytes=2 * 16 * D2 * 4)  # TS=16
    out2 = jax.block_until_ready(out2)
    ref2 = coupled_pooling_ref(x2)
    assert out2.shape == (B2, 2 * D2), out2.shape
    assert jnp.allclose(out2, ref2, atol=1e-5, rtol=1e-5), "mismatch (tiled/masked)"

    print("KERNEL_OK")
</pallas_src>

<mosaic_0001>
module attributes {stable_mosaic.version = 11 : i64} {
  func.func @_coupled_pooling_kernel(%arg0: i32, %arg1: i32, %arg2: memref<2x8x32xf32, #tpu.memory_space<vmem>>, %arg3: memref<2x32xf32, #tpu.memory_space<vmem>>, %arg4: memref<2x32xf32, #tpu.memory_space<vmem>>, %arg5: memref<2x32xf32, #tpu.memory_space<vmem>>, %arg6: memref<2x32xf32, #tpu.memory_space<vmem>>) attributes {dimension_semantics = [#tpu.dimension_semantics<parallel>, #tpu.dimension_semantics<arbitrary>], iteration_bounds = array<i64: 1, 1>, scalar_prefetch = 0 : i64, scratch_operands = 2 : i64, tpu.core_type = #tpu.core_type<tc>, window_params = [{transform_indices = @transform_0, window_bounds = array<i64: 2, 8, 32>}, {transform_indices = @transform_1, window_bounds = array<i64: 2, 32>}, {transform_indices = @transform_2, window_bounds = array<i64: 2, 32>}]} {
    %c0_i32 = arith.constant 0 : i32
    %0 = arith.cmpi eq, %arg1, %c0_i32 : i32
    %1 = arith.extui %0 : i1 to i32
    %c0_i32_0 = arith.constant 0 : i32
    %2 = arith.cmpi ne, %1, %c0_i32_0 : i32
    scf.if %2 {
      %cst_14 = arith.constant 0.000000e+00 : f32
      %15 = vector.broadcast %cst_14 : f32 to vector<2x32xf32>
      %c0_15 = arith.constant 0 : index
      %c0_16 = arith.constant 0 : index
      %16 = vector.load %arg5[%c0_15, %c0_16] : memref<2x32xf32, #tpu.memory_space<vmem>>, vector<2x32xf32>
      tpu.vector_store %arg5[%c0_15, %c0_16], %15 {strides = array<i32>} : memref<2x32xf32, #tpu.memory_space<vmem>>, vector<2x32xf32>,
      %cst_17 = arith.constant 0xFF800000 : f32
      %17 = vector.broadcast %cst_17 : f32 to vector<2x32xf32>
      %c0_18 = arith.constant 0 : index
      %c0_19 = arith.constant 0 : index
      %18 = vector.load %arg6[%c0_18, %c0_19] : memref<2x32xf32, #tpu.memory_space<vmem>>, vector<2x32xf32>
      tpu.vector_store %arg6[%c0_18, %c0_19], %17 {strides = array<i32>} : memref<2x32xf32, #tpu.memory_space<vmem>>, vector<2x32xf32>,
    } else {
    }
    %c0 = arith.constant 0 : index
    %c0_1 = arith.constant 0 : index
    %c0_2 = arith.constant 0 : index
    %3 = vector.load %arg2[%c0, %c0_1, %c0_2] : memref<2x8x32xf32, #tpu.memory_space<vmem>>, vector<2x8x32xf32>
    %c0_3 = arith.constant 0 : index
    %c0_4 = arith.constant 0 : index
    %4 = vector.load %arg5[%c0_3, %c0_4] : memref<2x32xf32, #tpu.memory_space<vmem>>, vector<2x32xf32>
    %cst = arith.constant dense<0.000000e+00> : vector<2x32xf32>
    %5 = vector.multi_reduction <add>, %3, %cst [1] : vector<2x8x32xf32> to vector<2x32xf32>
    %6 = arith.addf %4, %5 : vector<2x32xf32>
    %c0_5 = arith.constant 0 : index
    %c0_6 = arith.constant 0 : index
    %7 = vector.load %arg5[%c0_5, %c0_6] : memref<2x32xf32, #tpu.memory_space<vmem>>, vector<2x32xf32>
    tpu.vector_store %arg5[%c0_5, %c0_6], %6 {strides = array<i32>} : memref<2x32xf32, #tpu.memory_space<vmem>>, vector<2x32xf32>,
    %c0_7 = arith.constant 0 : index
    %c0_8 = arith.constant 0 : index
    %8 = vector.load %arg6[%c0_7, %c0_8] : memref<2x32xf32, #tpu.memory_space<vmem>>, vector<2x32xf32>
    %cst_9 = arith.constant dense<0xFF800000> : vector<2x32xf32>
    %9 = vector.multi_reduction <maximumf>, %3, %cst_9 [1] : vector<2x8x32xf32> to vector<2x32xf32>
    %10 = arith.maximumf %8, %9 : vector<2x32xf32>
    %c0_10 = arith.constant 0 : index
    %c0_11 = arith.constant 0 : index
    %11 = vector.load %arg6[%c0_10, %c0_11] : memref<2x32xf32, #tpu.memory_space<vmem>>, vector<2x32xf32>
    tpu.vector_store %arg6[%c0_10, %c0_11], %10 {strides = array<i32>} : memref<2x32xf32, #tpu.memory_space<vmem>>, vector<2x32xf32>,
    %c0_i32_12 = arith.constant 0 : i32
    %12 = arith.cmpi eq, %arg1, %c0_i32_12 : i32
    %13 = arith.extui %12 : i1 to i32
    %c0_i32_13 = arith.constant 0 : i32
    %14 = arith.cmpi ne, %13, %c0_i32_13 : i32
    scf.if %14 {
      %c0_14 = arith.constant 0 : index
      %c0_15 = arith.constant 0 : index
      %15 = vector.load %arg5[%c0_14, %c0_15] : memref<2x32xf32, #tpu.memory_space<vmem>>, vector<2x32xf32>
      %cst_16 = arith.constant 1.250000e-01 : f32
      %16 = vector.broadcast %cst_16 : f32 to vector<2x32xf32>
      %17 = arith.mulf %15, %16 : vector<2x32xf32>
      %c0_17 = arith.constant 0 : index
      %c0_18 = arith.constant 0 : index
      %18 = vector.load %arg3[%c0_17, %c0_18] : memref<2x32xf32, #tpu.memory_space<vmem>>, vector<2x32xf32>
      tpu.vector_store %arg3[%c0_17, %c0_18], %17 {strides = array<i32>} : memref<2x32xf32, #tpu.memory_space<vmem>>, vector<2x32xf32>,
      %c0_19 = arith.constant 0 : index
      %c0_20 = arith.constant 0 : index
      %19 = vector.load %arg6[%c0_19, %c0_20] : memref<2x32xf32, #tpu.memory_space<vmem>>, vector<2x32xf32>
      %c0_21 = arith.constant 0 : index
      %c0_22 = arith.constant 0 : index
      %20 = vector.load %arg4[%c0_21, %c0_22] : memref<2x32xf32, #tpu.memory_space<vmem>>, vector<2x32xf32>
      tpu.vector_store %arg4[%c0_21, %c0_22], %19 {strides = array<i32>} : memref<2x32xf32, #tpu.memory_space<vmem>>, vector<2x32xf32>,
    } else {
    }
    return
  }
  func.func @transform_0(%arg0: i32, %arg1: i32) -> (i32, i32, i32) {
    %c0_i32 = arith.constant 0 : i32
    %c0_i32_0 = arith.constant 0 : i32
    return %arg0, %arg1, %c0_i32 : i32, i32, i32
  }
  func.func @transform_1(%arg0: i32, %arg1: i32) -> (i32, i32) {
    %c0_i32 = arith.constant 0 : i32
    %c0_i32_0 = arith.constant 0 : i32
    return %arg0, %c0_i32 : i32, i32
  }
  func.func @transform_2(%arg0: i32, %arg1: i32) -> (i32, i32) {
    %c0_i32 = arith.constant 0 : i32
    %c0_i32_0 = arith.constant 0 : i32
    return %arg0, %c0_i32 : i32, i32
  }
}

</mosaic_0001>

<llo_original>
// kernel: tpu_custom_call.1
$region0: #{tpu_custom_call.1}
  #allocation0 [shape = 'u32[]', space=smem, size = 0x4, offset = 0x4, fixed_abs, tag = 'smem constant byte address 0x4 - core index']
  #allocation1 [shape = 'u32[144,128]{1,0:T(1,128)}', space=vmem, size = 0x12000, scoped, tag = 'internal scratch']
  #allocation2 [shape = 'f32[2,32]{1,0:T(2,128)}', space=vmem, size = 0x400, scoped, tag = 'scratch operand']
  #allocation3 [shape = 'f32[2,32]{1,0:T(2,128)}', space=vmem, size = 0x400, scoped, tag = 'scratch operand']
  %s0 = inlined_call_operand.hbm [shape: f32[2,8,32], index: 0, kind: input, shape index: {}]
  %s1 = inlined_call_operand.hbm [shape: f32[2,32], index: 1, kind: output, shape index: {0}]
  %s2 = inlined_call_operand.hbm [shape: f32[2,32], index: 2, kind: output, shape index: {1}]
  %3 = xla_tuple %s1, %s2
  %s4 = sld [smem:[#allocation0]]
  $region34: #{tpu_custom_call.1} parent=0
    _
  %s6 = ssub.s32 1, %s4
  %s7 = scalar_select 0, %s6, %s4
  $region1: #{tpu_custom_call.1} parent=0
    #allocation4 [shape = 'u8[8192]{0}', space=vmem, size = 0x2000, scoped, tag = 'input window, operand 0, single buffered']
    #allocation5 [shape = 's32[1]{0}', space=sflag, size = 0x4, scoped, tag = 'scoped memory for tpu_custom_call.1']
    #allocation6 [shape = 's32[1]{0}', space=sflag, size = 0x4, scoped, tag = 'scoped memory for tpu_custom_call.1']
    #allocation7 [shape = 'u8[1024]{0}', space=vmem, size = 0x400, scoped, tag = 'output window, operand 0, single buffered']
    #allocation8 [shape = 'u8[1024]{0}', space=vmem, size = 0x400, scoped, tag = 'output window, operand 1, single buffered']
    #allocation9 [shape = 's32[1]{0}', space=sflag, size = 0x4, scoped, tag = 'scoped memory for tpu_custom_call.1']
    %8 = vsyncpa [#allocation5], 0
    %9 = vsyncpa [#allocation6], 0
    %10 = vsyncpa [#allocation9], 0
    // Predicated region
    $region2: #{tpu_custom_call.1} parent=1 // pred_check
      _
    $region3: #{tpu_custom_call.1} parent=1 // pred_check_branch
      %12 = sbr.rel (0) target = $region5
    $region4: #{tpu_custom_call.1} parent=1 // pred_region
      %s14 = ssub.s32 256, 256
      %15 = vsyncadd [#allocation5], %s14
      %s16 = sshll.u32 [#allocation4], 4
      %s17 = int_to_ptr.vmem [resolvable:$true] %s16
      %22 = dma.hbm_to_vmem [thread:$0]  %s0, 256, %s17, [#allocation5], 128, 128, 8
    $region5: #{tpu_custom_call.1} parent=1 // pred_fallthru
      _
    // Predicated region
    $region6: #{tpu_custom_call.1} parent=1 // pred_check
      _
    $region7: #{tpu_custom_call.1} parent=1 // pred_check_branch
      %24 = sbr.rel (0) target = $region9
    $region8: #{tpu_custom_call.1} parent=1 // pred_region
      %25 = dma.done [#allocation5], 256
    $region9: #{tpu_custom_call.1} parent=1 // pred_fallthru
      _
    %p26 = scmp.eq.s32.totalorder 0, 0
    // Predicated region
    $region10: #{tpu_custom_call.1} parent=1 // pred_check
      %p27 = pneg %p26
    $region11: #{tpu_custom_call.1} parent=1 // pred_check_branch
      %29 = sbr.rel (%p27) target = $region13
    $region12: #{tpu_custom_call.1} parent=1 // pred_region
      %vm30 = vcmask 254976
      %31 = vst.msk [vmem:[#allocation2] sm:$0x3] %vm30, 0.0
      %32 = vst.msk [vmem:[#allocation3] sm:$0x3] %vm30, -inf
    $region13: #{tpu_custom_call.1} parent=1 // pred_fallthru
      _
    %v33 = vld [vmem:[#allocation4] sm:$0xff]
    %v34 = vld [vmem:[#allocation4 + $0x8] sm:$0xff]
    %v35 = vld [vmem:[#allocation2] sm:$0x3]
    %vm36 = vcmask 261120
    %v37 = vsel %vm36, %v33, 0.0
    %v38 = vrot.slane %v37, 4
    %v39 = vadd.f32 %v37, %v38
    %v40 = vrot.slane %v39, 2
    %v41 = vadd.f32 %v39, %v40
    %v42 = vrot.slane %v41, 1
    %v43 = vadd.f32 %v41, %v42
    %v44 = vsel %vm36, %v34, 0.0
    %v45 = vrot.slane %v44, 4
    %v46 = vadd.f32 %v44, %v45
    %v47 = vrot.slane %v46, 2
    %v48 = vadd.f32 %v46, %v47
    %v49 = vrot.slane %v48, 1
    %v50 = vadd.f32 %v48, %v49
    %vm53 = vcmask 1041409
    %v54 = vsel %vm53, %v50, %v43
    %v56 = vadd.f32 %v35, %v54
    %vm57 = vcmask 254976
    %58 = vst.msk [vmem:[#allocation2] sm:$0x3] %vm57, %v56
    %v59 = vld [vmem:[#allocation3] sm:$0x3]
    %v60 = vsel %vm36, %v33, -inf
    %v61 = vrot.slane %v60, 4
    %v62 = vmax.f32 %v60, %v61
    %v63 = vrot.slane %v62, 2
    %v64 = vmax.f32 %v62, %v63
    %v65 = vrot.slane %v64, 1
    %v66 = vmax.f32 %v64, %v65
    %v67 = vsel %vm36, %v34, -inf
    %v68 = vrot.slane %v67, 4
    %v69 = vmax.f32 %v67, %v68
    %v70 = vrot.slane %v69, 2
    %v71 = vmax.f32 %v69, %v70
    %v72 = vrot.slane %v71, 1
    %v73 = vmax.f32 %v71, %v72
    %v76 = vsel %vm53, %v73, %v66
    %v78 = vmax.f32 %v59, %v76
    %79 = vst.msk [vmem:[#allocation3] sm:$0x3] %vm57, %v78
    // Predicated region
    $region14: #{tpu_custom_call.1} parent=1 // pred_check
      %p80 = pneg %p26
    $region15: #{tpu_custom_call.1} parent=1 // pred_check_branch
      %82 = sbr.rel (%p80) target = $region17
    $region16: #{tpu_custom_call.1} parent=1 // pred_region
      %v83 = vld [vmem:[#allocation2] sm:$0x3]
      %v84 = vmul.f32 %v83, 0.125
      %85 = vst.msk [vmem:[#allocation7] sm:$0x3] %vm57, %v84
      %v86 = vld [vmem:[#allocation3] sm:$0x3]
      %87 = vst.msk [vmem:[#allocation8] sm:$0x3] %vm57, %v86
    $region17: #{tpu_custom_call.1} parent=1 // pred_fallthru
      _
    // Predicated region
    $region18: #{tpu_custom_call.1} parent=1 // pred_check
      _
    $region19: #{tpu_custom_call.1} parent=1 // pred_check_branch
      %89 = sbr.rel (0) target = $region21
    $region20: #{tpu_custom_call.1} parent=1 // pred_region
      %s91 = ssub.s32 32, 32
      %92 = vsyncadd [#allocation6], %s91
      %s94 = sshll.u32 [#allocation7], 4
      %s95 = int_to_ptr.vmem [resolvable:$true] %s94
      %97 = dma.vmem_to_hbm [thread:$0]  %s95, 32, %s1, [#allocation6]
    $region21: #{tpu_custom_call.1} parent=1 // pred_fallthru
      _
    // Predicated region
    $region22: #{tpu_custom_call.1} parent=1 // pred_check
      _
    $region23: #{tpu_custom_call.1} parent=1 // pred_check_branch
      %99 = sbr.rel (0) target = $region25
    $region24: #{tpu_custom_call.1} parent=1 // pred_region
      %s101 = ssub.s32 32, 32
      %102 = vsyncadd [#allocation9], %s101
      %s104 = sshll.u32 [#allocation8], 4
      %s105 = int_to_ptr.vmem [resolvable:$true] %s104
      %107 = dma.vmem_to_hbm [thread:$0]  %s105, 32, %s2, [#allocation9]
    $region25: #{tpu_custom_call.1} parent=1 // pred_fallthru
      _
    // Predicated region
    $region26: #{tpu_custom_call.1} parent=1 // pred_check
      _
    $region27: #{tpu_custom_call.1} parent=1 // pred_check_branch
      %109 = sbr.rel (0) target = $region29
    $region28: #{tpu_custom_call.1} parent=1 // pred_region
      %110 = dma.done [#allocation6], 32
    $region29: #{tpu_custom_call.1} parent=1 // pred_fallthru
      _
    // Predicated region
    $region30: #{tpu_custom_call.1} parent=1 // pred_check
      _
    $region31: #{tpu_custom_call.1} parent=1 // pred_check_branch
      %112 = sbr.rel (0) target = $region33
    $region32: #{tpu_custom_call.1} parent=1 // pred_region
      %113 = dma.done [#allocation9], 32
    $region33: #{tpu_custom_call.1} parent=1 // pred_fallthru
      _
    %114 = vsyncpa [#allocation5], 1
    %115 = vsyncpa [#allocation6], 1
    %116 = vsyncpa [#allocation9], 1

</llo_original>
